<compile_context>
chip_gen: v7x
topology: tpu7x:2x2x1
jax: 0.10.0
libtpu: 0.0.40
codegen_flags: <defaults>
</compile_context>

<pallas_src>
import functools

import numpy as np

import jax
import jax.numpy as jnp
from jax import lax
from jax.experimental import pallas as pl
from jax.experimental.pallas import tpu as pltpu


def _round_up(x, m):
    return (x + m - 1) // m * m


def _vmem_capacity_bytes():
    """Physical VMEM of the attached TPU (128 MiB v5e/v6e, 64 MiB v7x)."""
    try:
        return int(pltpu.get_tpu_info().vmem_capacity_bytes)
    except Exception:
        return 64 * 1024 * 1024          # conservative (v7x-sized) fallback


def _dft_kernel(x_ref, w_ref, o_ref):
    # One MXU matmul per (column-tile, batch-tile): (TB, Lp) @ (Lp, TN) -> (TB, TN).
    # Window is pre-folded into W; re/im are packed column-wise so the store
    # path is a lane-dense f32 slab (unmasked vst).
    o_ref[...] = jnp.dot(x_ref[...], w_ref[...],
                         preferred_element_type=jnp.float32)


@functools.lru_cache(maxsize=32)
def _dft_matrix_np(L, L_pad, n, NC_pad):
    """(L_pad, NC_pad) float32 DFT matrix: cols [0,n)=cos, [n,2n)=-sin, rest 0.

    Built once per (L, n) on host in float64 with exact integer phase
    reduction ((m*k) mod n) so phase stays accurate for large L, n.
    Rows m >= min(n, L) are zero: torch truncation (n < L) and the L -> L_pad
    contraction padding are both mathematically inert.  Padding columns
    [2n, NC_pad) stay zero so the output stays lane-dense without changing
    results.
    """
    m = np.arange(L_pad, dtype=np.int64)[:, None]
    k = np.arange(n, dtype=np.int64)[None, :]
    ang = 2.0 * np.pi * ((m * k) % n).astype(np.float64) / float(n)
    valid = (m < min(n, L)).astype(np.float64)
    W = np.zeros((L_pad, NC_pad), dtype=np.float64)
    W[:, :n] = np.cos(ang) * valid
    W[:, n:2 * n] = -np.sin(ang) * valid
    return W.astype(np.float32)


def _w_block_spec(block_shape, index_map, single_buffer):
    """BlockSpec for W; request a single VMEM buffer when W is grid-invariant."""
    if single_buffer:
        try:
            return pl.BlockSpec(block_shape, index_map,
                                pipeline_mode=pl.Buffered(1))
        except TypeError:          # jax build without pipeline_mode= support
            pass
    return pl.BlockSpec(block_shape, index_map)


@functools.partial(jax.jit, static_argnames=("n", "fft_dim", "compute_dtype"))
def fft_base_forward(x, window, n, fft_dim, compute_dtype=jnp.bfloat16):
    """JAX/Pallas equivalent of _FFTBase.forward (real-valued input X).

    x:      real float array of arbitrary rank (cube_dims).
    window: 1-D float array of length == x.shape[fft_dim] or length 1.
    n:      number of FFT points.
    Returns complex64, shape = x.shape with fft_dim replaced by n.
    """
    cube_dims = x.ndim
    fft_dim = fft_dim % cube_dims
    L = x.shape[fft_dim]

    # ---- window handling (length must be L or 1, as in the torch module) ----
    window = jnp.asarray(window, jnp.float32).reshape(-1)
    if window.shape[0] == 1:
        win_col = jnp.broadcast_to(window, (L,))[:, None]
    elif window.shape[0] == L:
        win_col = window[:, None]
    else:
        raise ValueError(
            f"window length {window.shape[0]} must be 1 or equal to "
            f"x.shape[fft_dim]={L}")

    # ---- glue: move fft_dim last, flatten leading dims ----
    perm = [d for d in range(cube_dims) if d != fft_dim] + [fft_dim]
    inv_perm = [perm.index(d) for d in range(cube_dims)]
    x_t = jnp.transpose(x, perm)
    lead_shape = x_t.shape[:-1]
    B = int(np.prod(lead_shape)) if lead_shape else 1
    x2 = x_t.reshape(B, L)

    # ---- tiling geometry (generation-aware VMEM budget) ----
    itemsize = jnp.dtype(compute_dtype).itemsize
    sub_m = 8 * (4 // itemsize)          # sublane multiple: 8 for f32, 16 for bf16
    L_pad = _round_up(L, 128)            # MXU/lane-aligned contraction length
    NC = _round_up(2 * n, 128)           # packed [real | imag] lane-dense columns

    vmem_cap = _vmem_capacity_bytes()
    tile_budget = int(vmem_cap * 0.45)   # headroom for Mosaic scratch / pipelining

    # Column tile: double-buffered weight slab 2*L_pad*TN*itemsize <= budget/3.
    tn_max = max(128, (tile_budget // 3) // (2 * L_pad * itemsize) // 128 * 128)
    TN = min(NC, tn_max, 4096)
    grid_n = pl.cdiv(NC, TN)
    TN = _round_up(pl.cdiv(NC, grid_n), 128)      # equal column tiles, no ragged tail
    grid_n = pl.cdiv(NC, TN)
    NC_pad = TN * grid_n

    # Batch tile: x tile + f32 output tile (both double-buffered) from the rest.
    B_req = _round_up(B, sub_m)
    rem = max(tile_budget - 2 * L_pad * TN * itemsize, tile_budget // 4)
    per_row = 2 * L_pad * itemsize + 2 * TN * 4
    tb_max = max(sub_m, rem // per_row // sub_m * sub_m)
    TB = min(B_req, tb_max, 1024)
    grid_b = pl.cdiv(B_req, TB)
    # v7x has 2 TensorCores: make sure a 'parallel' axis has >= 2 steps.
    if grid_b * grid_n == 1 and B_req >= 2 * sub_m:
        grid_b = 2
    TB = _round_up(pl.cdiv(B_req, grid_b), sub_m)  # equal batch tiles, no ragged tail
    grid_b = pl.cdiv(B_req, TB)
    B_pad = TB * grid_b

    # Single VMEM buffer for a grid-invariant W (only worth it for big slabs;
    # also keeps the small-shape path on the well-trodden default).
    use_single_w = (grid_n == 1) and (L_pad * NC_pad * itemsize >= (4 << 20))

    # Scoped-VMEM request from the real tile footprint (conservative: W counted
    # double-buffered), with headroom, capped below physical.
    footprint = (2 * TB * L_pad * itemsize
                 + 2 * L_pad * TN * itemsize
                 + 2 * TB * TN * 4)
    vmem_limit = int(min(max(int(1.25 * footprint) + (2 << 20), 32 << 20),
                         int(vmem_cap * 0.9)))

    # ---- operand preparation ----
    if (B_pad != B) or (L_pad != L):
        x2 = jnp.pad(x2, ((0, B_pad - B), (0, L_pad - L)))
    x2 = x2.astype(compute_dtype)

    # DFT matrix with the window folded into its rows (host-cached per (L, n)).
    win_pad = jnp.pad(win_col, ((0, L_pad - L), (0, 0)))
    w = (jnp.asarray(_dft_matrix_np(L, L_pad, n, NC_pad)) * win_pad
         ).astype(compute_dtype)

    # ---- cost estimate matching the chosen loop order ----
    x_traffic = (grid_n if grid_n > 1 else 1) * B_pad * L_pad * itemsize
    cost = pl.CostEstimate(
        flops=2 * B_pad * L_pad * NC_pad,
        transcendentals=0,
        bytes_accessed=x_traffic + L_pad * NC_pad * itemsize + B_pad * NC_pad * 4)

    # ---- grid / specs ----
    if grid_n == 1:
        grid = (grid_b,)
        in_specs = [
            pl.BlockSpec((TB, L_pad), lambda i: (i, 0)),
            _w_block_spec((L_pad, TN), lambda i: (0, 0), use_single_w),
        ]
        out_specs = pl.BlockSpec((TB, TN), lambda i: (i, 0))
        dims = ("parallel",)
    else:
        # Column tile outer, batch inner: each weight column tile is fetched
        # from HBM exactly once; the smaller x tiles are re-streamed instead.
        grid = (grid_n, grid_b)
        in_specs = [
            pl.BlockSpec((TB, L_pad), lambda j, i: (i, 0)),
            pl.BlockSpec((L_pad, TN), lambda j, i: (0, j)),
        ]
        out_specs = pl.BlockSpec((TB, TN), lambda j, i: (i, j))
        dims = ("parallel", "parallel")

    out = pl.pallas_call(
        _dft_kernel,
        out_shape=jax.ShapeDtypeStruct((B_pad, NC_pad), jnp.float32),
        grid_spec=pltpu.PrefetchScalarGridSpec(
            num_scalar_prefetch=0,
            grid=grid,
            in_specs=in_specs,
            out_specs=out_specs),
        compiler_params=pltpu.CompilerParams(
            dimension_semantics=dims,
            vmem_limit_bytes=vmem_limit),
        cost_estimate=cost,
    )(x2, w)

    # ---- glue: slice padding away, reassemble complex, restore axis order ----
    re = out[:B, :n]
    im = out[:B, n:2 * n]
    y = lax.complex(re, im).reshape(*lead_shape, n)
    return jnp.transpose(y, inv_perm)


def _check(y, ref, xw_abs_sum):
    """Rigorous bf16 error check.

    Per-element error of a bf16-input / f32-accumulate DFT matmul is bounded by
    ~2^-7 * sum_m |x_m * w_m|; we allow 2x margin plus a small absolute slack
    for the reference FFT's own rounding.
    """
    err = jnp.abs(y - ref)
    bound = (2.0 ** -6) * xw_abs_sum + 1e-3
    assert bool(jnp.all(err <= bound)), float(jnp.max(err - bound))
    rel = float(jnp.linalg.norm(y - ref) / jnp.linalg.norm(ref))
    assert rel < 1e-2, rel


if __name__ == "__main__":
    # Small shapes consistent with the module: cube_dims=4 (NCHW).
    key = jax.random.PRNGKey(0)
    B_, C_, H_, W_ = 2, 4, 16, 16
    x = jax.random.normal(key, (B_, C_, H_, W_), dtype=jnp.float32)

    # Hann window of length W_ (as in __init__ with shape [1,1,1,W_]).
    k = jnp.arange(W_, dtype=jnp.float32)
    hann = 0.5 - 0.5 * jnp.cos(2.0 * jnp.pi * k / (W_ - 1))

    # Case 1: fft over the last axis, n == axis length, Hann window.
    n1, d1 = 16, 3
    y1 = jax.block_until_ready(fft_base_forward(x, hann, n1, d1))
    ref1 = jnp.fft.fft(x * hann.reshape(1, 1, 1, W_), n=n1, axis=d1).astype(jnp.complex64)
    assert y1.shape == ref1.shape and y1.dtype == jnp.complex64
    xw1 = jnp.sum(jnp.abs(x * hann.reshape(1, 1, 1, W_)), axis=d1, keepdims=True)
    _check(y1, ref1, xw1)

    # Case 1b: float32 fallback compute path (precision-sensitive use).
    y1f = jax.block_until_ready(
        fft_base_forward(x, hann, n1, d1, compute_dtype=jnp.float32))
    assert y1f.shape == ref1.shape and y1f.dtype == jnp.complex64
    _check(y1f, ref1, xw1)

    # Case 2: default window (ones(1)), fft over dim 2, zero-padding n > L.
    n2, d2 = 32, 2
    ones_w = jnp.ones((1,), dtype=jnp.float32)
    y2 = jax.block_until_ready(fft_base_forward(x, ones_w, n2, d2))
    ref2 = jnp.fft.fft(x, n=n2, axis=d2).astype(jnp.complex64)
    assert y2.shape == ref2.shape and y2.dtype == jnp.complex64
    xw2 = jnp.sum(jnp.abs(x), axis=d2, keepdims=True)
    _check(y2, ref2, xw2)

    # Case 3: truncation n < L, fft over the last axis, Hann window.
    n3, d3 = 8, 3
    y3 = jax.block_until_ready(fft_base_forward(x, hann, n3, d3))
    ref3 = jnp.fft.fft(x * hann.reshape(1, 1, 1, W_), n=n3, axis=d3).astype(jnp.complex64)
    assert y3.shape == ref3.shape and y3.dtype == jnp.complex64
    xw3 = jnp.sum(jnp.abs((x * hann.reshape(1, 1, 1, W_))[..., :n3]),
                  axis=d3, keepdims=True)
    _check(y3, ref3, xw3)

    print("KERNEL_OK")
</pallas_src>

<mosaic_0001>
module attributes {stable_mosaic.version = 11 : i64} {
  func.func @_dft_kernel(%arg0: i32, %arg1: memref<64x128xbf16, #tpu.memory_space<vmem>>, %arg2: memref<128x128xbf16, #tpu.memory_space<vmem>>, %arg3: memref<64x128xf32, #tpu.memory_space<vmem>>) attributes {dimension_semantics = [#tpu.dimension_semantics<parallel>], iteration_bounds = array<i64: 2>, scalar_prefetch = 0 : i64, scratch_operands = 0 : i64, tpu.core_type = #tpu.core_type<tc>, window_params = [{transform_indices = @transform_0, window_bounds = array<i64: 64, 128>}, {pipeline_mode = #tpu.pipeline_mode<synchronous>, transform_indices = @transform_1, window_bounds = array<i64: 128, 128>}, {transform_indices = @transform_2, window_bounds = array<i64: 64, 128>}]} {
    %c0 = arith.constant 0 : index
    %c0_0 = arith.constant 0 : index
    %0 = vector.load %arg1[%c0, %c0_0] : memref<64x128xbf16, #tpu.memory_space<vmem>>, vector<64x128xbf16>
    %c0_1 = arith.constant 0 : index
    %c0_2 = arith.constant 0 : index
    %1 = vector.load %arg2[%c0_1, %c0_2] : memref<128x128xbf16, #tpu.memory_space<vmem>>, vector<128x128xbf16>
    %cst = arith.constant dense<0.000000e+00> : vector<64x128xf32>
    %2 = tpu.matmul %0, %1, %cst {dimension_numbers = #tpu.dot_dimension_numbers<[1], [0], [0], [1], [0, 0, 1, 1], [], []>} : vector<64x128xbf16>, vector<128x128xbf16>, vector<64x128xf32> -> vector<64x128xf32>
    %c0_3 = arith.constant 0 : index
    %c0_4 = arith.constant 0 : index
    %3 = vector.load %arg3[%c0_3, %c0_4] : memref<64x128xf32, #tpu.memory_space<vmem>>, vector<64x128xf32>
    tpu.vector_store %arg3[%c0_3, %c0_4], %2 {strides = array<i32>} : memref<64x128xf32, #tpu.memory_space<vmem>>, vector<64x128xf32>,
    return
  }
  func.func @transform_0(%arg0: i32) -> (i32, i32) {
    %c0_i32 = arith.constant 0 : i32
    %c0_i32_0 = arith.constant 0 : i32
    return %arg0, %c0_i32 : i32, i32
  }
  func.func @transform_1(%arg0: i32) -> (i32, i32) {
    %c0_i32 = arith.constant 0 : i32
    %c0_i32_0 = arith.constant 0 : i32
    %c0_i32_1 = arith.constant 0 : i32
    return %c0_i32, %c0_i32_0 : i32, i32
  }
  func.func @transform_2(%arg0: i32) -> (i32, i32) {
    %c0_i32 = arith.constant 0 : i32
    %c0_i32_0 = arith.constant 0 : i32
    return %arg0, %c0_i32 : i32, i32
  }
}

</mosaic_0001>

<llo_original>
// kernel: custom-call
$region0: #{custom-call}
  %s0 = inlined_call_operand.vmem [shape: f32[2,4,16,16], index: 0, kind: input, shape index: {}]
  %s1 = inlined_call_operand.vmem [shape: f32[2,4,16,16], index: 1, kind: input, shape index: {}]
  %s2 = inlined_call_operand.hbm [shape: c64[2,4,16,16], index: 2, kind: output, shape index: {}]
  %s3 = scalar_lea.hbm %s2, 2048
  $region1: #{custom-call} parent=0
    #allocation0 [shape = 's32[1]{0}', space=sflag, size = 0x4, scoped, tag = 'scoped memory for custom-call']
    %4 = vsyncpa [#allocation0], 0
    %s5 = sshll.u32 %s0, 4
    %s6 = int_to_ptr.vmem [resolvable:$true] %s5
    %8 = dma.vmem_to_hbm [thread:$0]  %s6, 2048, %s2, [#allocation0]
    %9 = dma.done [#allocation0], 2048
    %10 = vsyncpa [#allocation0], 1
  $region2: #{custom-call} parent=0
    #allocation1 [shape = 's32[1]{0}', space=sflag, size = 0x4, scoped, tag = 'scoped memory for custom-call']
    %11 = vsyncpa [#allocation1], 0
    %s12 = sshll.u32 %s1, 4
    %s13 = int_to_ptr.vmem [resolvable:$true] %s12
    %15 = dma.vmem_to_hbm [thread:$0]  %s13, 2048, %s3, [#allocation1]
    %16 = dma.done [#allocation1], 2048
    %17 = vsyncpa [#allocation1], 1

// kernel: fft_base_forward.1
$region0: #{fft_base_forward.1}
  #allocation0 [shape = 'u32[]', space=smem, size = 0x4, offset = 0x4, fixed_abs, tag = 'smem constant byte address 0x4 - core index']
  #allocation1 [shape = 'u32[144,128]{1,0:T(1,128)}', space=vmem, size = 0x12000, scoped, tag = 'internal scratch']
  %s0 = inlined_call_operand.vmem [shape: bf16[128,128], index: 0, kind: input, shape index: {}]
  %s1 = inlined_call_operand.vmem [shape: bf16[128,128], index: 1, kind: input, shape index: {}]
  %s2 = inlined_call_operand.vmem [shape: f32[128,128], index: 2, kind: output, shape index: {}]
  %s3 = sld [smem:[#allocation0]]
  $region41: #{fft_base_forward.1} parent=0
    _
  %s5 = ssub.s32 1, %s3
  %s6 = scalar_select 0, %s5, %s3
  loop: start=0, step=1, limit=4
  $region2: #{fft_base_forward.1} parent=0 // loop_pre_header
    _
  $region3: #{fft_base_forward.1} parent=0 // loop_header
    %s8 = sphi 0, %s12
    %p9 = scmp.ge.s32.totalorder %s8, 4
    %s18 = sphi 0, %s20
    %s21 = sphi 0, %s18
    %s22 = sphi 0, %s21
    %s38 = sphi 0, %s22
    %s42 = sphi 0, %s42
    %s44 = sphi 0, %s42
    %s45 = sphi 0, %s44
    %s59 = sphi 0, %s45
    %s65 = sphi 0, %s67
    %s68 = sphi 0, %s65
    %s69 = sphi 0, %s68
    %s85 = sphi 0, %s69
  $region4: #{fft_base_forward.1} parent=0 // loop_header_branch
    %11 = sbr.rel (%p9) target = $region8
  $region5: #{fft_base_forward.1} parent=0 // loop_body
    %s13 = ssub.s32 %s8, 1
    %s14 = ssub.s32 %s8, 2
    %s15 = sadd.s32 %s8, 1
    %s16 = ssub.s32 %s8, %s15
    %p17 = scmp.eq.s32.totalorder %s16, 0
    %s19 = sadd.s32 %s18, 1
    %s20 = scalar_select %p17, %s18, %s19
    %p23 = pneg %p17
    %p24 = scmp.eq.s32.totalorder %s8, 1
    %p25 = por %p23, %p24
    %p26 = scmp.ne.s32.totalorder %s18, %s21
    %p27 = scmp.eq.s32.totalorder %s8, 0
    %p28 = por %p26, %p27
    %p29 = scmp.ne.s32.totalorder %s18, %s21
    %p30 = scmp.eq.s32.totalorder %s13, 1
    %p31 = por %p29, %p30
    %p32 = scmp.ne.s32.totalorder %s21, %s22
    %p33 = scmp.eq.s32.totalorder %s13, 0
    %p34 = por %p32, %p33
    %p35 = scmp.ne.s32.totalorder %s21, %s22
    %p36 = scmp.eq.s32.totalorder %s14, 1
    %p37 = por %p35, %p36
    %p39 = scmp.ne.s32.totalorder %s22, %s38
    %p40 = scmp.eq.s32.totalorder %s14, 0
    %p41 = por %p39, %p40
    %s43 = sadd.s32 %s42, 1
    %p46 = scmp.eq.s32.totalorder %s8, 1
    %p47 = scmp.ne.s32.totalorder %s42, %s44
    %p48 = scmp.eq.s32.totalorder %s8, 0
    %p49 = por %p47, %p48
    %p50 = scmp.ne.s32.totalorder %s42, %s44
    %p51 = scmp.eq.s32.totalorder %s13, 1
    %p52 = por %p50, %p51
    %p53 = scmp.ne.s32.totalorder %s44, %s45
    %p54 = scmp.eq.s32.totalorder %s13, 0
    %p55 = por %p53, %p54
    %p56 = scmp.ne.s32.totalorder %s44, %s45
    %p57 = scmp.eq.s32.totalorder %s14, 1
    %p58 = por %p56, %p57
    %p60 = scmp.ne.s32.totalorder %s45, %s59
    %p61 = scmp.eq.s32.totalorder %s14, 0
    %p62 = por %p60, %p61
    %s63 = ssub.s32 %s8, %s15
    %p64 = scmp.eq.s32.totalorder %s63, 0
    %s66 = sadd.s32 %s65, 1
    %s67 = scalar_select %p64, %s65, %s66
    %p70 = pneg %p64
    %p71 = scmp.eq.s32.totalorder %s8, 1
    %p72 = por %p70, %p71
    %p73 = scmp.ne.s32.totalorder %s65, %s68
    %p74 = scmp.eq.s32.totalorder %s8, 0
    %p75 = por %p73, %p74
    %p76 = scmp.ne.s32.totalorder %s65, %s68
    %p77 = scmp.eq.s32.totalorder %s13, 1
    %p78 = por %p76, %p77
    %p79 = scmp.ne.s32.totalorder %s68, %s69
    %p80 = scmp.eq.s32.totalorder %s13, 0
    %p81 = por %p79, %p80
    %p82 = scmp.ne.s32.totalorder %s68, %s69
    %p83 = scmp.eq.s32.totalorder %s14, 1
    %p84 = por %p82, %p83
    %p86 = scmp.ne.s32.totalorder %s69, %s85
    %p87 = scmp.eq.s32.totalorder %s14, 0
    %p88 = por %p86, %p87
    %p89 = scmp.le.s32.totalorder 1, %s8
    %p90 = scmp.lt.s32.totalorder %s8, 3
    %p91 = pnand %p89, %p90
    %p92 = pneg %p91
    // Predicated region
    $region9: #{fft_base_forward.1} parent=5 // pred_check
      _
    $region10: #{fft_base_forward.1} parent=5 // pred_check_branch
      %94 = sbr.rel (%p91) target = $region12
    $region11: #{fft_base_forward.1} parent=5 // pred_region
      %s95 = ssub.s32 %s8, 1
      // Predicated region
      $region13: #{fft_base_forward.1} parent=11 // pred_check
        %p96 = pneg %p55
      $region14: #{fft_base_forward.1} parent=11 // pred_check_branch
        %98 = sbr.rel (%p96) target = $region16
      $region15: #{fft_base_forward.1} parent=11 // pred_region
        _
      $region16: #{fft_base_forward.1} parent=11 // pred_fallthru
        _
    $region12: #{fft_base_forward.1} parent=5 // pred_fallthru
      _
    %p99 = scmp.lt.s32.totalorder %s8, 2
    // Predicated region
    $region17: #{fft_base_forward.1} parent=5 // pred_check
      %p100 = pneg %p99
    $region18: #{fft_base_forward.1} parent=5 // pred_check_branch
      %102 = sbr.rel (%p100) target = $region20
    $region19: #{fft_base_forward.1} parent=5 // pred_region
      // Predicated region
      $region21: #{fft_base_forward.1} parent=19 // pred_check
        %p103 = pneg %p28
      $region22: #{fft_base_forward.1} parent=19 // pred_check_branch
        %105 = sbr.rel (%p103) target = $region24
      $region23: #{fft_base_forward.1} parent=19 // pred_region
        %s106 = smul.u32 8, %s8
        %p107 = scmp.lt.s32.totalorder %s106, 15
        %s108 = scalar_select %p107, %s106, 15
        %s109 = smul.addr %s108, 4
        %s110 = scalar_lea.vmem %s0, %s109
        %s111 = smul.u32 8, %s8
      $region24: #{fft_base_forward.1} parent=19 // pred_fallthru
        _
    $region20: #{fft_base_forward.1} parent=5 // pred_fallthru
      _
    %p112 = scmp.le.s32.totalorder 1, %s8
    %p113 = scmp.lt.s32.totalorder %s8, 3
    %p114 = pnand %p112, %p113
    %p115 = pneg %p114
    // Predicated region
    $region25: #{fft_base_forward.1} parent=5 // pred_check
      _
    $region26: #{fft_base_forward.1} parent=5 // pred_check_branch
      %117 = sbr.rel (%p114) target = $region28
    $region27: #{fft_base_forward.1} parent=5 // pred_region
      %s118 = ssub.s32 %s8, 1
      %s119 = smul.u32 8, %s13
      %p120 = scmp.lt.s32.totalorder %s119, 15
      %s121 = scalar_select %p120, %s119, 15
      %s122 = smul.addr %s121, 4
      %s123 = scalar_lea.vmem %s0, %s122
      %p124 = pneg %p34
      %p125 = pneg %p31
      %p126 = pneg %p55
      %p127 = pneg %p52
      %p128 = pneg %p81
      %p129 = pneg %p78
      %s130 = smul.u32 8, %s13
      %p131 = scmp.lt.s32.totalorder %s130, 15
      %s132 = scalar_select %p131, %s130, 15
      %s133 = smul.addr %s132, 8
      %s134 = scalar_lea.vmem %s2, %s133
      %s135 = smul.u32 8, %s13
      %p136 = scmp.lt.s32.totalorder %s135, 15
      %s137 = scalar_select %p136, %s135, 15
      %s138 = smul.addr %s137, 4
      %s139 = scalar_lea.vmem %s0, %s138
      %s140 = smul.u32 8, %s13
      %s141 = smul.u32 8, %s13
      %p142 = scmp.lt.s32.totalorder %s141, 15
      %s143 = scalar_select %p142, %s141, 15
      %s144 = smul.addr %s143, 8
      %s145 = scalar_lea.vmem %s2, %s144
      %s146 = smul.u32 8, %s13
      %v148 = vld [vmem:[%s139] sm:$0xf]
      %v149 = vld [vmem:[%s139 + $0x4] sm:$0xf]
      %v150 = vld [vmem:[%s139 + $0x8] sm:$0xf]
      %v151 = vld [vmem:[%s139 + $0xc] sm:$0xf]
      %v152 = vld [vmem:[%s139 + $0x10] sm:$0xf]
      %v153 = vld [vmem:[%s139 + $0x14] sm:$0xf]
      %v154 = vld [vmem:[%s139 + $0x18] sm:$0xf]
      %v155 = vld [vmem:[%s139 + $0x1c] sm:$0xf]
      %v156 = vld [vmem:[%s1] sm:$0xf]
      %v157 = vld [vmem:[%s1 + $0x4] sm:$0xf]
      %v158 = vld [vmem:[%s1 + $0x8] sm:$0xf]
      %v159 = vld [vmem:[%s1 + $0xc] sm:$0xf]
      %v160 = vld [vmem:[%s1 + $0x10] sm:$0xf]
      %v161 = vld [vmem:[%s1 + $0x14] sm:$0xf]
      %v162 = vld [vmem:[%s1 + $0x18] sm:$0xf]
      %v163 = vld [vmem:[%s1 + $0x1c] sm:$0xf]
      %v164 = vld [vmem:[%s1 + $0x20] sm:$0xf]
      %v165 = vld [vmem:[%s1 + $0x24] sm:$0xf]
      %v166 = vld [vmem:[%s1 + $0x28] sm:$0xf]
      %v167 = vld [vmem:[%s1 + $0x2c] sm:$0xf]
      %v168 = vld [vmem:[%s1 + $0x30] sm:$0xf]
      %v169 = vld [vmem:[%s1 + $0x34] sm:$0xf]
      %v170 = vld [vmem:[%s1 + $0x38] sm:$0xf]
      %v171 = vld [vmem:[%s1 + $0x3c] sm:$0xf]
      %v180 = vunpack.c.l.b16 %v148
      %v181 = vunpack.c.l.b16 %v149
      %v182 = vunpack.c.l.b16 %v150
      %v183 = vunpack.c.l.b16 %v151
      %v184 = vunpack.c.l.b16 %v152
      %v185 = vunpack.c.l.b16 %v153
      %v186 = vunpack.c.l.b16 %v154
      %v187 = vunpack.c.l.b16 %v155
      %v188 = vpack.c.b16 %v181, %v180
      %v189 = vpack.c.b16 %v183, %v182
      %v190 = vpack.c.b16 %v185, %v184
      %v191 = vpack.c.b16 %v187, %v186
      %v212 = vunpack.c.l.b16 %v156
      %v213 = vunpack.c.l.b16 %v157
      %v214 = vunpack.c.l.b16 %v158
      %v215 = vunpack.c.l.b16 %v159
      %v216 = vunpack.c.l.b16 %v160
      %v217 = vunpack.c.l.b16 %v161
      %v218 = vunpack.c.l.b16 %v162
      %v219 = vunpack.c.l.b16 %v163
      %v220 = vunpack.c.l.b16 %v164
      %v221 = vunpack.c.l.b16 %v165
      %v222 = vunpack.c.l.b16 %v166
      %v223 = vunpack.c.l.b16 %v167
      %v224 = vunpack.c.l.b16 %v168
      %v225 = vunpack.c.l.b16 %v169
      %v226 = vunpack.c.l.b16 %v170
      %v227 = vunpack.c.l.b16 %v171
      %v228 = vpack.c.b16 %v213, %v212
      %v229 = vpack.c.b16 %v215, %v214
      %v230 = vpack.c.b16 %v217, %v216
      %v231 = vpack.c.b16 %v219, %v218
      %v232 = vpack.c.b16 %v221, %v220
      %v233 = vpack.c.b16 %v223, %v222
      %v234 = vpack.c.b16 %v225, %v224
      %v235 = vpack.c.b16 %v227, %v226
      %244 = vmatprep.subr.bf16.mxu0 0
      %245 = vmatpush1.bf16.msra.mxu0 %v228
      %246 = vmatprep.subr.bf16.mxu0 0
      %247 = vmatpush1.bf16.msra.mxu0 %v229
      %248 = vmatprep.subr.bf16.mxu0 0
      %249 = vmatpush1.bf16.msra.mxu0 %v230
      %250 = vmatprep.subr.bf16.mxu0 0
      %251 = vmatpush1.bf16.msra.mxu0 %v231
      %252 = vmatprep.subr.bf16.mxu0 0
      %253 = vmatpush1.bf16.msra.mxu0 %v232
      %254 = vmatprep.subr.bf16.mxu0 0
      %255 = vmatpush1.bf16.msra.mxu0 %v233
      %256 = vmatprep.subr.bf16.mxu0 0
      %257 = vmatpush1.bf16.msra.mxu0 %v234
      %258 = vmatprep.subr.bf16.mxu0 0
      %259 = vmatpush1.bf16.msra.mxu0 %v235
      %260 = vmatprep.subr.bf16.mxu0 0
      %261 = vmatpush1.bf16.msra.mxu0 0
      %262 = vmatprep.subr.bf16.mxu0 0
      %263 = vmatpush1.bf16.msra.mxu0 0
      %264 = vmatprep.subr.bf16.mxu0 0
      %265 = vmatpush1.bf16.msra.mxu0 0
      %266 = vmatprep.subr.bf16.mxu0 0
      %267 = vmatpush1.bf16.msra.mxu0 0
      %268 = vmatprep.subr.bf16.mxu0 0
      %269 = vmatpush1.bf16.msra.mxu0 0
      %270 = vmatprep.subr.bf16.mxu0 0
      %271 = vmatpush1.bf16.msra.mxu0 0
      %272 = vmatprep.subr.bf16.mxu0 0
      %273 = vmatpush1.bf16.msra.mxu0 0
      %274 = vmatprep.subr.bf16.mxu0 0
      %275 = vmatpush1.bf16.msra.mxu0 0
      %276 = vmatprep.mubr.bf16.mxu0 0
      %277 = vmatmul.mubr.bf16.gmra.mrb[0].mxu0 %v188
      %v278 = vpop.f32.mrb[0].mxu0
      %v279 = vadd.f32 0.0, %v278
      %v280 = vpop.f32.mrb[0].mxu0
      %v281 = vpop.f32.mrb[0].mxu0
      %v282 = vadd.f32 0.0, %v281
      %v283 = vpop.f32.mrb[0].mxu0
      %284 = vmatprep.mubr.bf16.mxu0 0
      %285 = vmatmul.mubr.bf16.gmra.mrb[0].mxu0 %v189
      %v286 = vpop.f32.mrb[0].mxu0
      %v287 = vadd.f32 0.0, %v286
      %v288 = vpop.f32.mrb[0].mxu0
      %v289 = vpop.f32.mrb[0].mxu0
      %v290 = vadd.f32 0.0, %v289
      %v291 = vpop.f32.mrb[0].mxu0
      %292 = vmatprep.mubr.bf16.mxu0 0
      %293 = vmatmul.mubr.bf16.gmra.mrb[0].mxu0 %v190
      %v294 = vpop.f32.mrb[0].mxu0
      %v295 = vadd.f32 0.0, %v294
      %v296 = vpop.f32.mrb[0].mxu0
      %v297 = vpop.f32.mrb[0].mxu0
      %v298 = vadd.f32 0.0, %v297
      %v299 = vpop.f32.mrb[0].mxu0
      %300 = vmatprep.mubr.bf16.mxu0 0
      %301 = vmatmul.mubr.bf16.gmra.mrb[0].mxu0 %v191
      %v302 = vpop.f32.mrb[0].mxu0
      %v303 = vadd.f32 0.0, %v302
      %v304 = vpop.f32.mrb[0].mxu0
      %v305 = vpop.f32.mrb[0].mxu0
      %v306 = vadd.f32 0.0, %v305
      %v307 = vpop.f32.mrb[0].mxu0
      %308 = vdwg.mxu0
      %309 = vst [vmem:[%s145] sm:$0xff] %v279
      %310 = vst [vmem:[%s145 + $0x8] sm:$0xff] %v282
      %311 = vst [vmem:[%s145 + $0x10] sm:$0xff] %v287
      %312 = vst [vmem:[%s145 + $0x18] sm:$0xff] %v290
      %313 = vst [vmem:[%s145 + $0x20] sm:$0xff] %v295
      %314 = vst [vmem:[%s145 + $0x28] sm:$0xff] %v298
      %315 = vst [vmem:[%s145 + $0x30] sm:$0xff] %v303
      %316 = vst [vmem:[%s145 + $0x38] sm:$0xff] %v306
      %s317 = smul.u32 8, %s13
      %p318 = scmp.lt.s32.totalorder %s317, 15
      %s319 = scalar_select %p318, %s317, 15
      %s320 = smul.addr %s319, 8
      %s321 = scalar_lea.vmem %s2, %s320
      // Predicated region
      $region29: #{fft_base_forward.1} parent=27 // pred_check
        %p322 = pneg %p78
      $region30: #{fft_base_forward.1} parent=27 // pred_check_branch
        %324 = sbr.rel (%p322) target = $region32
      $region31: #{fft_base_forward.1} parent=27 // pred_region
        %s325 = smul.u32 8, %s13
      $region32: #{fft_base_forward.1} parent=27 // pred_fallthru
        _
    $region28: #{fft_base_forward.1} parent=5 // pred_fallthru
      _
    %p326 = scmp.le.s32.totalorder 2, %s8
    // Predicated region
    $region33: #{fft_base_forward.1} parent=5 // pred_check
      %p327 = pneg %p326
    $region34: #{fft_base_forward.1} parent=5 // pred_check_branch
      %329 = sbr.rel (%p327) target = $region36
    $region35: #{fft_base_forward.1} parent=5 // pred_region
      %s330 = ssub.s32 %s8, 2
      // Predicated region
      $region37: #{fft_base_forward.1} parent=35 // pred_check
        %p331 = pneg %p84
      $region38: #{fft_base_forward.1} parent=35 // pred_check_branch
        %333 = sbr.rel (%p331) target = $region40
      $region39: #{fft_base_forward.1} parent=35 // pred_region
        %s334 = smul.u32 8, %s14
        %p335 = scmp.lt.s32.totalorder %s334, 15
        %s336 = scalar_select %p335, %s334, 15
        %s337 = smul.addr %s336, 8
        %s338 = scalar_lea.vmem %s2, %s337
      $region40: #{fft_base_forward.1} parent=35 // pred_fallthru
        _
    $region36: #{fft_base_forward.1} parent=5 // pred_fallthru
      _
  $region6: #{fft_base_forward.1} parent=0 // loop_footer
    %s12 = sadd.s32 1, %s8
  $region7: #{fft_base_forward.1} parent=0 // loop_footer_branch
    %7 = sbr.rel target = $region3
  $region8: #{fft_base_forward.1} parent=0 // loop_exit
    _

</llo_original>
